<compile_context>
chip_gen: v6e
topology: v6e:2x2x1
jax: 0.10.0
libtpu: 0.0.40
codegen_flags: <defaults>
</compile_context>

<pallas_src>
import functools

import jax
import jax.numpy as jnp
from jax import lax
from jax.experimental import pallas as pl
from jax.experimental.pallas import tpu as pltpu


def _round_up(x, m):
    return -(-x // m) * m


def _vmem_budget_bytes():
    """~75% of physical VMEM, capped at 100 MiB (v5e/v6e ~96 MiB, v7x 48 MiB)."""
    try:
        cap = pltpu.get_tpu_info().vmem_capacity_bytes
    except Exception:
        cap = 64 * 1024 * 1024  # conservative (v7x-sized) fallback
    return int(min(cap * 3 // 4, 100 * 1024 * 1024))


_VMEM_BUDGET = _vmem_budget_bytes()


def _pick_tile(D, target=512):
    """Largest 128-aligned tile <= target dividing D (256-multiples preferred);
    full D if D <= target; None -> caller must pad D."""
    if D <= target:
        return D
    for t in (512, 256, 128):
        if t <= target and D % t == 0:
            return t
    return None


def _linear_kernel_single_k(x_ref, w_ref, b_ref, o_ref):
    # Whole contraction in one MXU pass: no accumulator, no zero-init.
    # x tile (tm, D) x W tile (tn, D) contracted on last dims -> (tm, tn).
    o_ref[...] = (
        lax.dot_general(
            x_ref[...],
            w_ref[...],
            dimension_numbers=(((1,), (1,)), ((), ())),
            preferred_element_type=jnp.float32,
        )
        + b_ref[...]
    ).astype(o_ref.dtype)


def _linear_kernel_multi_k(x_ref, w_ref, b_ref, o_ref, acc_ref):
    # grid = (M tiles, N tiles, K tiles); K innermost ("arbitrary").
    k = pl.program_id(2)
    tk = w_ref.shape[1]
    start = pl.multiple_of(k * tk, tk)
    # x is K-resident (block (tm, D)); slice the current K chunk in VMEM.
    part = lax.dot_general(
        x_ref[:, pl.ds(start, tk)],
        w_ref[...],
        dimension_numbers=(((1,), (1,)), ((), ())),
        preferred_element_type=jnp.float32,
    )

    @pl.when(k == 0)
    def _():
        acc_ref[...] = part  # assign-on-first-step: no zeros store

    @pl.when(k > 0)
    def _():
        acc_ref[...] += part

    @pl.when(k == pl.num_programs(2) - 1)
    def _():
        o_ref[...] = (acc_ref[...] + b_ref[...]).astype(o_ref.dtype)


@functools.partial(jax.jit, static_argnames=("stream_weights_bf16",))
def linear_layer_forward(sequence, weight, bias, *, stream_weights_bf16=False):
    """sequence: (bs, S, E); weight: (D, D) nn.Linear convention; bias: (D,)."""
    bs, seq_len, emb_dim = sequence.shape
    D = seq_len * emb_dim
    assert weight.shape == (D, D)
    assert bias.shape == (D,)

    # --- feature-dim tiling; pad D only when it has no 128-aligned divisor ---
    t = _pick_tile(D)
    Dp = D if t is not None else _round_up(D, 256)
    tk = _pick_tile(Dp)
    tn = tk

    # --- batch (M) tiling: prefer a single M tile so the weight is streamed
    #     over HBM exactly once per call; shrink only if VMEM budget demands ---
    w_bytes = 2 if stream_weights_bf16 else 4
    x_bytes = 2 if stream_weights_bf16 else 4
    sub = 16 if stream_weights_bf16 else 8  # sublane granularity per dtype
    tm = min(_round_up(bs, sub), 1024)

    def footprint(tm_, w_buf):
        k_steps_ = Dp // tk
        return (
            2 * tm_ * Dp * x_bytes            # K-resident x (double buffered)
            + w_buf * tn * tk * w_bytes       # streamed weight tiles
            + 2 * tm_ * tn * 4                # output tiles
            + (tm_ * tn * 4 if k_steps_ > 1 else 0)  # f32 accumulator
            + 2 * tn * 4                      # bias
        )

    while tm > sub and footprint(tm, 2) > _VMEM_BUDGET:
        tm = max(sub, _round_up(tm // 2, sub))
    Mp = _round_up(bs, tm)

    # --- v7x: keep a "parallel" axis of extent >= 2 so both TensorCores run ---
    if Mp // tm == 1 and Dp // tn == 1 and Dp >= 256 and (Dp // 2) % 128 == 0:
        tn = Dp // 2

    # --- host-side padding / dtype prep ---
    x = sequence.reshape(bs, D)
    w = weight
    b = bias
    if Dp != D:
        x = jnp.pad(x, ((0, 0), (0, Dp - D)))
        w = jnp.pad(w, ((0, Dp - D), (0, Dp - D)))
        b = jnp.pad(b, ((0, Dp - D),))
    if Mp != bs:
        x = jnp.pad(x, ((0, Mp - bs), (0, 0)))
    if stream_weights_bf16:
        # Opt-in: halves weight/activation HBM traffic; accumulation stays f32.
        x = x.astype(jnp.bfloat16)
        w = w.astype(jnp.bfloat16)
    b2 = b.reshape(1, Dp).astype(jnp.float32)

    m_steps = Mp // tm
    n_steps = Dp // tn
    k_steps = Dp // tk

    if k_steps == 1:
        # Fast path: no accumulator scratch, 2-D grid.
        out = pl.pallas_call(
            _linear_kernel_single_k,
            out_shape=jax.ShapeDtypeStruct((Mp, Dp), sequence.dtype),
            grid_spec=pltpu.PrefetchScalarGridSpec(
                num_scalar_prefetch=0,
                grid=(m_steps, n_steps),
                in_specs=[
                    pl.BlockSpec((tm, Dp), lambda i, j: (i, 0)),   # x (resident over j)
                    pl.BlockSpec((tn, Dp), lambda i, j: (j, 0)),   # W (out, in), no transpose
                    pl.BlockSpec((1, tn), lambda i, j: (0, j)),    # bias
                ],
                out_specs=pl.BlockSpec((tm, tn), lambda i, j: (i, j)),
            ),
            compiler_params=pltpu.CompilerParams(
                dimension_semantics=("parallel", "parallel"),
                vmem_limit_bytes=_VMEM_BUDGET,
            ),
        )(x, w, b2)
    else:
        # Deepen weight buffering only when the reduction is long and it fits VMEM.
        w_buf = 3 if (k_steps >= 4 and footprint(tm, 3) <= _VMEM_BUDGET) else 2
        if w_buf != 2:
            w_spec = pl.BlockSpec((tn, tk), lambda i, j, k: (j, k),
                                  pipeline_mode=pl.Buffered(w_buf))
        else:
            w_spec = pl.BlockSpec((tn, tk), lambda i, j, k: (j, k))

        out = pl.pallas_call(
            _linear_kernel_multi_k,
            out_shape=jax.ShapeDtypeStruct((Mp, Dp), sequence.dtype),
            grid_spec=pltpu.PrefetchScalarGridSpec(
                num_scalar_prefetch=0,
                grid=(m_steps, n_steps, k_steps),
                in_specs=[
                    pl.BlockSpec((tm, Dp), lambda i, j, k: (i, 0)),  # x resident over j,k
                    w_spec,                                          # W tile (out, in)
                    pl.BlockSpec((1, tn), lambda i, j, k: (0, j)),   # bias
                ],
                out_specs=pl.BlockSpec((tm, tn), lambda i, j, k: (i, j)),
                scratch_shapes=[pltpu.VMEM((tm, tn), jnp.float32)],
            ),
            compiler_params=pltpu.CompilerParams(
                dimension_semantics=("parallel", "parallel", "arbitrary"),
                vmem_limit_bytes=_VMEM_BUDGET,
            ),
        )(x, w, b2)

    out = out[:bs, :D]  # drop M / feature padding
    return out.reshape(bs, seq_len, emb_dim)


if __name__ == "__main__":
    batch, seq_len, emb_dim = 2, 8, 32
    D = seq_len * emb_dim  # 256

    key = jax.random.PRNGKey(0)
    k_x, k_w, k_b = jax.random.split(key, 3)

    sequence = jax.random.normal(k_x, (batch, seq_len, emb_dim), dtype=jnp.float32)
    # Deterministic init mimicking nn.Linear's uniform(-1/sqrt(D), 1/sqrt(D))
    bound = 1.0 / (D ** 0.5)
    weight = jax.random.uniform(
        k_w, (D, D), minval=-bound, maxval=bound, dtype=jnp.float32
    )
    bias = jax.random.uniform(
        k_b, (D,), minval=-bound, maxval=bound, dtype=jnp.float32
    )

    out = linear_layer_forward(sequence, weight, bias)
    out = jax.block_until_ready(out)

    # Reference check (plain JAX) to confirm forward semantics.
    ref = (sequence.reshape(batch, D) @ weight.T + bias).reshape(
        batch, seq_len, emb_dim
    )
    assert out.shape == (batch, seq_len, emb_dim)
    assert jnp.allclose(out, ref, atol=1e-4, rtol=1e-4)

    print("KERNEL_OK")
</pallas_src>

<mosaic_0001>
module attributes {stable_mosaic.version = 11 : i64} {
  func.func @_linear_kernel_single_k(%arg0: i32, %arg1: i32, %arg2: memref<8x256xf32, #tpu.memory_space<vmem>>, %arg3: memref<128x256xf32, #tpu.memory_space<vmem>>, %arg4: memref<1x128xf32, #tpu.memory_space<vmem>>, %arg5: memref<8x128xf32, #tpu.memory_space<vmem>>) attributes {dimension_semantics = [#tpu.dimension_semantics<parallel>, #tpu.dimension_semantics<parallel>], iteration_bounds = array<i64: 1, 2>, scalar_prefetch = 0 : i64, scratch_operands = 0 : i64, tpu.core_type = #tpu.core_type<tc>, window_params = [{transform_indices = @transform_0, window_bounds = array<i64: 8, 256>}, {transform_indices = @transform_1, window_bounds = array<i64: 128, 256>}, {transform_indices = @transform_2, window_bounds = array<i64: 1, 128>}, {transform_indices = @transform_3, window_bounds = array<i64: 8, 128>}]} {
    %c0 = arith.constant 0 : index
    %c0_0 = arith.constant 0 : index
    %0 = vector.load %arg2[%c0, %c0_0] : memref<8x256xf32, #tpu.memory_space<vmem>>, vector<8x256xf32>
    %c0_1 = arith.constant 0 : index
    %c0_2 = arith.constant 0 : index
    %1 = vector.load %arg3[%c0_1, %c0_2] : memref<128x256xf32, #tpu.memory_space<vmem>>, vector<128x256xf32>
    %cst = arith.constant dense<0.000000e+00> : vector<8x128xf32>
    %2 = tpu.matmul %0, %1, %cst {dimension_numbers = #tpu.dot_dimension_numbers<[1], [1], [0], [0], [0, 0, 1, 0], [], []>} : vector<8x256xf32>, vector<128x256xf32>, vector<8x128xf32> -> vector<8x128xf32>
    %c0_3 = arith.constant 0 : index
    %c0_4 = arith.constant 0 : index
    %3 = vector.load %arg4[%c0_3, %c0_4] : memref<1x128xf32, #tpu.memory_space<vmem>>, vector<1x128xf32>
    %4 = vector.broadcast %3 : vector<1x128xf32> to vector<8x128xf32>
    %5 = arith.addf %2, %4 : vector<8x128xf32>
    %c0_5 = arith.constant 0 : index
    %c0_6 = arith.constant 0 : index
    %6 = vector.load %arg5[%c0_5, %c0_6] : memref<8x128xf32, #tpu.memory_space<vmem>>, vector<8x128xf32>
    tpu.vector_store %arg5[%c0_5, %c0_6], %5 {strides = array<i32>} : memref<8x128xf32, #tpu.memory_space<vmem>>, vector<8x128xf32>,
    return
  }
  func.func @transform_0(%arg0: i32, %arg1: i32) -> (i32, i32) {
    %c0_i32 = arith.constant 0 : i32
    %c0_i32_0 = arith.constant 0 : i32
    return %arg0, %c0_i32 : i32, i32
  }
  func.func @transform_1(%arg0: i32, %arg1: i32) -> (i32, i32) {
    %c0_i32 = arith.constant 0 : i32
    %c0_i32_0 = arith.constant 0 : i32
    return %arg1, %c0_i32 : i32, i32
  }
  func.func @transform_2(%arg0: i32, %arg1: i32) -> (i32, i32) {
    %c0_i32 = arith.constant 0 : i32
    %c0_i32_0 = arith.constant 0 : i32
    return %c0_i32, %arg1 : i32, i32
  }
  func.func @transform_3(%arg0: i32, %arg1: i32) -> (i32, i32) {
    %c0_i32 = arith.constant 0 : i32
    return %arg0, %arg1 : i32, i32
  }
}

</mosaic_0001>

<llo_original>
// kernel: linear_layer_forward.1
$region0: #{linear_layer_forward.1}
  #allocation0 [shape = 'u32[]', space=smem, size = 0x4, offset = 0x4, fixed_abs, tag = 'smem constant byte address 0x4 - core index']
  #allocation1 [shape = 'u32[144,128]{1,0:T(1,128)}', space=vmem, size = 0x12000, scoped, tag = 'internal scratch']
  %s0 = inlined_call_operand.vmem [shape: f32[8,256], index: 0, kind: input, shape index: {}]
  %s1 = inlined_call_operand.hbm [shape: f32[256,256], index: 1, kind: input, shape index: {}]
  %s2 = inlined_call_operand.vmem [shape: f32[1,256], index: 2, kind: input, shape index: {}]
  %s3 = inlined_call_operand.vmem [shape: f32[8,256], index: 3, kind: output, shape index: {}]
  %s4 = sld [smem:[#allocation0]]
  $region49: #{linear_layer_forward.1} parent=0
    _
  %s6 = ssub.s32 1, %s4
  %s7 = scalar_select 0, %s6, %s4
  $region1: #{linear_layer_forward.1} parent=0
    #allocation2 [shape = 'u8[262144]{0}', space=vmem, size = 0x40000, scoped, tag = 'input window, operand 1']
    #allocation3 [shape = 's32[2]{0}', space=sflag, size = 0x8, scoped, tag = 'scoped memory for linear_layer_forward.1']
    %8 = vsyncpa [#allocation3], 0
    %s9 = scalar_lea.sflag [#allocation3], 1
    %10 = vsyncpa %s9, 0
    loop: start=0, step=1, limit=4
    $region2: #{linear_layer_forward.1} parent=1 // loop_pre_header
      _
    $region3: #{linear_layer_forward.1} parent=1 // loop_header
      %s12 = sphi 0, %s16
      %p13 = scmp.ge.s32.totalorder %s12, 4
      %s19 = sphi 0, %s31
      %s20 = sphi 0, %s27
      %s21 = sphi 0, %s19
      %s22 = sphi 0, %s20
      %s23 = sphi 0, %s21
      %s24 = sphi 0, %s22
      %s34 = sphi 0, %s36
      %s37 = sphi 0, %s34
      %s38 = sphi 0, %s37
      %s54 = sphi 0, %s38
      %s60 = sphi 0, %s62
      %s63 = sphi 0, %s60
      %s64 = sphi 0, %s63
      %s80 = sphi 0, %s64
      %s86 = sphi 0, %s88
      %s89 = sphi 0, %s86
      %s90 = sphi 0, %s89
      %s106 = sphi 0, %s90
      %s114 = sphi 0, %s116
      %s117 = sphi 0, %s114
      %s118 = sphi 0, %s117
      %s134 = sphi 0, %s118
    $region4: #{linear_layer_forward.1} parent=1 // loop_header_branch
      %15 = sbr.rel (%p13) target = $region8
    $region5: #{linear_layer_forward.1} parent=1 // loop_body
      %s17 = ssub.s32 %s12, 1
      %s18 = ssub.s32 %s12, 2
      %s25 = sadd.s32 1, %s20
      %p26 = scmp.ge.s32.totalorder %s25, 2
      %s27 = scalar_select %p26, 0, %s25
      %s28 = sadd.s32 1, %s19
      %s29 = scalar_select %p26, %s28, %s19
      %p30 = scmp.ge.s32.totalorder %s29, 1
      %s31 = scalar_select %p30, 0, %s29
      %s32 = ssub.s32 %s19, %s31
      %p33 = scmp.eq.s32.totalorder %s32, 0
      %s35 = sadd.s32 %s34, 1
      %s36 = scalar_select %p33, %s34, %s35
      %p39 = pneg %p33
      %p40 = scmp.eq.s32.totalorder %s12, 1
      %p41 = por %p39, %p40
      %p42 = scmp.ne.s32.totalorder %s34, %s37
      %p43 = scmp.eq.s32.totalorder %s12, 0
      %p44 = por %p42, %p43
      %p45 = scmp.ne.s32.totalorder %s34, %s37
      %p46 = scmp.eq.s32.totalorder %s17, 1
      %p47 = por %p45, %p46
      %p48 = scmp.ne.s32.totalorder %s37, %s38
      %p49 = scmp.eq.s32.totalorder %s17, 0
      %p50 = por %p48, %p49
      %p51 = scmp.ne.s32.totalorder %s37, %s38
      %p52 = scmp.eq.s32.totalorder %s18, 1
      %p53 = por %p51, %p52
      %p55 = scmp.ne.s32.totalorder %s38, %s54
      %p56 = scmp.eq.s32.totalorder %s18, 0
      %p57 = por %p55, %p56
      %s58 = ssub.s32 %s20, %s27
      %p59 = scmp.eq.s32.totalorder %s58, 0
      %s61 = sadd.s32 %s60, 1
      %s62 = scalar_select %p59, %s60, %s61
      %p65 = pneg %p59
      %p66 = scmp.eq.s32.totalorder %s12, 1
      %p67 = por %p65, %p66
      %p68 = scmp.ne.s32.totalorder %s60, %s63
      %p69 = scmp.eq.s32.totalorder %s12, 0
      %p70 = por %p68, %p69
      %p71 = scmp.ne.s32.totalorder %s60, %s63
      %p72 = scmp.eq.s32.totalorder %s17, 1
      %p73 = por %p71, %p72
      %p74 = scmp.ne.s32.totalorder %s63, %s64
      %p75 = scmp.eq.s32.totalorder %s17, 0
      %p76 = por %p74, %p75
      %p77 = scmp.ne.s32.totalorder %s63, %s64
      %p78 = scmp.eq.s32.totalorder %s18, 1
      %p79 = por %p77, %p78
      %p81 = scmp.ne.s32.totalorder %s64, %s80
      %p82 = scmp.eq.s32.totalorder %s18, 0
      %p83 = por %p81, %p82
      %s84 = ssub.s32 %s20, %s27
      %p85 = scmp.eq.s32.totalorder %s84, 0
      %s87 = sadd.s32 %s86, 1
      %s88 = scalar_select %p85, %s86, %s87
      %p91 = pneg %p85
      %p92 = scmp.eq.s32.totalorder %s12, 1
      %p93 = por %p91, %p92
      %p94 = scmp.ne.s32.totalorder %s86, %s89
      %p95 = scmp.eq.s32.totalorder %s12, 0
      %p96 = por %p94, %p95
      %p97 = scmp.ne.s32.totalorder %s86, %s89
      %p98 = scmp.eq.s32.totalorder %s17, 1
      %p99 = por %p97, %p98
      %p100 = scmp.ne.s32.totalorder %s89, %s90
      %p101 = scmp.eq.s32.totalorder %s17, 0
      %p102 = por %p100, %p101
      %p103 = scmp.ne.s32.totalorder %s89, %s90
      %p104 = scmp.eq.s32.totalorder %s18, 1
      %p105 = por %p103, %p104
      %p107 = scmp.ne.s32.totalorder %s90, %s106
      %p108 = scmp.eq.s32.totalorder %s18, 0
      %p109 = por %p107, %p108
      %s110 = ssub.s32 %s19, %s31
      %s111 = ssub.s32 %s20, %s27
      %s112 = sor.u32 %s110, %s111
      %p113 = scmp.eq.s32.totalorder %s112, 0
      %s115 = sadd.s32 %s114, 1
      %s116 = scalar_select %p113, %s114, %s115
      %p119 = pneg %p113
      %p120 = scmp.eq.s32.totalorder %s12, 1
      %p121 = por %p119, %p120
      %p122 = scmp.ne.s32.totalorder %s114, %s117
      %p123 = scmp.eq.s32.totalorder %s12, 0
      %p124 = por %p122, %p123
      %p125 = scmp.ne.s32.totalorder %s114, %s117
      %p126 = scmp.eq.s32.totalorder %s17, 1
      %p127 = por %p125, %p126
      %p128 = scmp.ne.s32.totalorder %s117, %s118
      %p129 = scmp.eq.s32.totalorder %s17, 0
      %p130 = por %p128, %p129
      %p131 = scmp.ne.s32.totalorder %s117, %s118
      %p132 = scmp.eq.s32.totalorder %s18, 1
      %p133 = por %p131, %p132
      %p135 = scmp.ne.s32.totalorder %s118, %s134
      %p136 = scmp.eq.s32.totalorder %s18, 0
      %p137 = por %p135, %p136
      %p138 = scmp.le.s32.totalorder 1, %s12
      %p139 = scmp.lt.s32.totalorder %s12, 3
      %p140 = pnand %p138, %p139
      %p141 = pneg %p140
      // Predicated region
      $region9: #{linear_layer_forward.1} parent=5 // pred_check
        _
      $region10: #{linear_layer_forward.1} parent=5 // pred_check_branch
        %143 = sbr.rel (%p140) target = $region12
      $region11: #{linear_layer_forward.1} parent=5 // pred_region
        %s144 = ssub.s32 %s12, 1
        // Predicated region
        $region13: #{linear_layer_forward.1} parent=11 // pred_check
          %p145 = pneg %p50
        $region14: #{linear_layer_forward.1} parent=11 // pred_check_branch
          %147 = sbr.rel (%p145) target = $region16
        $region15: #{linear_layer_forward.1} parent=11 // pred_region
          %p148 = scmp.lt.s32.totalorder %s21, 0
          %s149 = scalar_select %p148, %s21, 0
          %s150 = smul.addr %s149, 2
          %s151 = smul.addr %s150, 8
          %s152 = scalar_lea.vmem %s0, %s151
        $region16: #{linear_layer_forward.1} parent=11 // pred_fallthru
          _
      $region12: #{linear_layer_forward.1} parent=5 // pred_fallthru
        _
      %p153 = scmp.lt.s32.totalorder %s12, 2
      // Predicated region
      $region17: #{linear_layer_forward.1} parent=5 // pred_check
        %p154 = pneg %p153
      $region18: #{linear_layer_forward.1} parent=5 // pred_check_branch
        %156 = sbr.rel (%p154) target = $region20
      $region19: #{linear_layer_forward.1} parent=5 // pred_region
        // Predicated region
        $region21: #{linear_layer_forward.1} parent=19 // pred_check
          %p157 = pneg %p70
        $region22: #{linear_layer_forward.1} parent=19 // pred_check_branch
          %159 = sbr.rel (%p157) target = $region24
        $region23: #{linear_layer_forward.1} parent=19 // pred_region
          %s160 = sand.u32 %s60, 1
          %s161 = scalar_lea.sflag [#allocation3], %s160
          %s162 = sand.u32 %s60, 1
          %s163 = smul.addr %s162, 256
          %s164 = scalar_lea.vmem [#allocation2], %s163
          %s165 = smul.u32 16, %s20
          %s167 = ssub.s32 4096, 4096
          %168 = vsyncadd %s161, %s167
          %s169 = smul.addr %s165, 2
          %s170 = smul.addr %s169, 128
          %s171 = scalar_lea.hbm %s1, %s170
          %s172 = sshll.u32 %s164, 4
          %s173 = int_to_ptr.vmem [resolvable:$true] %s172
          %178 = dma.hbm_to_vmem [thread:$0]  %s171, 4096, %s173, %s161, 256, 256, 16
        $region24: #{linear_layer_forward.1} parent=19 // pred_fallthru
          _
        // Predicated region
        $region25: #{linear_layer_forward.1} parent=19 // pred_check
          %p179 = pneg %p96
        $region26: #{linear_layer_forward.1} parent=19 // pred_check_branch
          %181 = sbr.rel (%p179) target = $region28
        $region27: #{linear_layer_forward.1} parent=19 // pred_region
          %p182 = scmp.lt.s32.totalorder %s20, 1
          %s183 = scalar_select %p182, %s20, 1
          %s184 = scalar_lea.vmem %s2, %s183
        $region28: #{linear_layer_forward.1} parent=19 // pred_fallthru
          _
      $region20: #{linear_layer_forward.1} parent=5 // pred_fallthru
        _
      %p185 = scmp.le.s32.totalorder 1, %s12
      %p186 = scmp.lt.s32.totalorder %s12, 3
      %p187 = pnand %p185, %p186
      %p188 = pneg %p187
      // Predicated region
      $region29: #{linear_layer_forward.1} parent=5 // pred_check
        _
      $region30: #{linear_layer_forward.1} parent=5 // pred_check_branch
        %190 = sbr.rel (%p187) target = $region32
      $region31: #{linear_layer_forward.1} parent=5 // pred_region
        %s191 = ssub.s32 %s12, 1
        %s192 = sand.u32 %s63, 1
        %s193 = scalar_lea.sflag [#allocation3], %s192
        %s194 = sand.u32 %s63, 1
        %s195 = smul.addr %s194, 256
        %s196 = scalar_lea.vmem [#allocation2], %s195
        // Predicated region
        $region33: #{linear_layer_forward.1} parent=31 // pred_check
          %p197 = pneg %p76
        $region34: #{linear_layer_forward.1} parent=31 // pred_check_branch
          %199 = sbr.rel (%p197) target = $region36
        $region35: #{linear_layer_forward.1} parent=31 // pred_region
          %200 = dma.done %s193, 4096
        $region36: #{linear_layer_forward.1} parent=31 // pred_fallthru
          _
        %p201 = scmp.lt.s32.totalorder %s21, 0
        %s202 = scalar_select %p201, %s21, 0
        %s203 = smul.addr %s202, 2
        %s204 = smul.addr %s203, 8
        %s205 = scalar_lea.vmem %s0, %s204
        %p206 = pneg %p50
        %p207 = pneg %p47
        %s208 = sand.u32 %s63, 1
        %s209 = scalar_lea.sflag [#allocation3], %s208
        %s210 = sand.u32 %s63, 1
        %s211 = smul.addr %s210, 256
        %s212 = scalar_lea.vmem [#allocation2], %s211
        %p213 = pneg %p76
        %p214 = pneg %p73
        %p215 = scmp.lt.s32.totalorder %s22, 1
        %s216 = scalar_select %p215, %s22, 1
        %s217 = scalar_lea.vmem %s2, %s216
        %p218 = pneg %p102
        %p219 = pneg %p99
        %p220 = pneg %p130
        %p221 = pneg %p127
        %p222 = scmp.lt.s32.totalorder %s21, 0
        %s223 = scalar_select %p222, %s21, 0
        %p224 = scmp.lt.s32.totalorder %s22, 1
        %s225 = scalar_select %p224, %s22, 1
        %s226 = smul.addr %s223, 2
        %s227 = sadd.s32 %s225, %s226
        %s228 = smul.addr %s227, 8
        %s229 = scalar_lea.vmem %s3, %s228
        %p230 = scmp.lt.s32.totalorder %s21, 0
        %s231 = scalar_select %p230, %s21, 0
        %s232 = smul.addr %s231, 2
        %s233 = smul.addr %s232, 8
        %s234 = scalar_lea.vmem %s0, %s233
        %s235 = smul.u32 16, %s22
        %p236 = scmp.lt.s32.totalorder %s22, 1
        %s237 = scalar_select %p236, %s22, 1
        %s238 = scalar_lea.vmem %s2, %s237
        %p239 = scmp.lt.s32.totalorder %s21, 0
        %s240 = scalar_select %p239, %s21, 0
        %p241 = scmp.lt.s32.totalorder %s22, 1
        %s242 = scalar_select %p241, %s22, 1
        %s243 = smul.addr %s240, 2
        %s244 = sadd.s32 %s242, %s243
        %s245 = smul.addr %s244, 8
        %s246 = scalar_lea.vmem %s3, %s245
        %v247 = vld [vmem:[%s234] sm:$0xff]
        %v248 = vld [vmem:[%s234 + $0x8] sm:$0xff]
        %v249 = vld [vmem:[%s196] sm:$0xff]
        %v250 = vld [vmem:[%s196 + $0x8] sm:$0xff]
        %v251 = vld [vmem:[%s196 + $0x10] sm:$0xff]
        %v252 = vld [vmem:[%s196 + $0x18] sm:$0xff]
        %v253 = vld [vmem:[%s196 + $0x20] sm:$0xff]
        %v254 = vld [vmem:[%s196 + $0x28] sm:$0xff]
        %v255 = vld [vmem:[%s196 + $0x30] sm:$0xff]
        %v256 = vld [vmem:[%s196 + $0x38] sm:$0xff]
        %v257 = vld [vmem:[%s196 + $0x40] sm:$0xff]
        %v258 = vld [vmem:[%s196 + $0x48] sm:$0xff]
        %v259 = vld [vmem:[%s196 + $0x50] sm:$0xff]
        %v260 = vld [vmem:[%s196 + $0x58] sm:$0xff]
        %v261 = vld [vmem:[%s196 + $0x60] sm:$0xff]
        %v262 = vld [vmem:[%s196 + $0x68] sm:$0xff]
        %v263 = vld [vmem:[%s196 + $0x70] sm:$0xff]
        %v264 = vld [vmem:[%s196 + $0x78] sm:$0xff]
        %v265 = vld [vmem:[%s196 + $0x80] sm:$0xff]
        %v266 = vld [vmem:[%s196 + $0x88] sm:$0xff]
        %v267 = vld [vmem:[%s196 + $0x90] sm:$0xff]
        %v268 = vld [vmem:[%s196 + $0x98] sm:$0xff]
        %v269 = vld [vmem:[%s196 + $0xa0] sm:$0xff]
        %v270 = vld [vmem:[%s196 + $0xa8] sm:$0xff]
        %v271 = vld [vmem:[%s196 + $0xb0] sm:$0xff]
        %v272 = vld [vmem:[%s196 + $0xb8] sm:$0xff]
        %v273 = vld [vmem:[%s196 + $0xc0] sm:$0xff]
        %v274 = vld [vmem:[%s196 + $0xc8] sm:$0xff]
        %v275 = vld [vmem:[%s196 + $0xd0] sm:$0xff]
        %v276 = vld [vmem:[%s196 + $0xd8] sm:$0xff]
        %v277 = vld [vmem:[%s196 + $0xe0] sm:$0xff]
        %v278 = vld [vmem:[%s196 + $0xe8] sm:$0xff]
        %v279 = vld [vmem:[%s196 + $0xf0] sm:$0xff]
        %v280 = vld [vmem:[%s196 + $0xf8] sm:$0xff]
        %v281 = vld [vmem:[%s238] sm:$0x1]
        %v283 = vlaneseq
        %v284 = vshrl.u32 %v283, 7
        %v285 = vsub.s32 0, %v284
        %v286 = vrot.slane %v281, %v285
        %288 = vmatprep.subr.mxu0 %v280
        %289 = vmatpush1.xpose.msra.mxu0 %v279
        %290 = vmatprep.subr.mxu0 %v278
        %291 = vmatpush1.xpose.msra.mxu0 %v277
        %292 = vmatprep.subr.mxu0 %v276
        %293 = vmatpush1.xpose.msra.mxu0 %v275
        %294 = vmatprep.subr.mxu0 %v274
        %295 = vmatpush1.xpose.msra.mxu0 %v273
        %296 = vmatprep.subr.mxu0 %v272
        %297 = vmatpush1.xpose.msra.mxu0 %v271
        %298 = vmatprep.subr.mxu0 %v270
        %299 = vmatpush1.xpose.msra.mxu0 %v269
        %300 = vmatprep.subr.mxu0 %v268
        %301 = vmatpush1.xpose.msra.mxu0 %v267
        %302 = vmatprep.subr.mxu0 %v266
        %303 = vmatpush1.xpose.msra.mxu0 %v265
        %304 = vmatprep.subr.mxu0 %v264
        %305 = vmatpush1.xpose.msra.mxu0 %v263
        %306 = vmatprep.subr.mxu0 %v262
        %307 = vmatpush1.xpose.msra.mxu0 %v261
        %308 = vmatprep.subr.mxu0 %v260
        %309 = vmatpush1.xpose.msra.mxu0 %v259
        %310 = vmatprep.subr.mxu0 %v258
        %311 = vmatpush1.xpose.msra.mxu0 %v257
        %312 = vmatprep.subr.mxu0 %v256
        %313 = vmatpush1.xpose.msra.mxu0 %v255
        %314 = vmatprep.subr.mxu0 %v254
        %315 = vmatpush1.xpose.msra.mxu0 %v253
        %316 = vmatprep.subr.mxu0 %v252
        %317 = vmatpush1.xpose.msra.mxu0 %v251
        %318 = vmatprep.subr.mxu0 %v250
        %319 = vmatpush1.xpose.msra.mxu0 %v249
        %320 = vmatprep.subr.mxu0 0.0
        %321 = vmatpush2.xpose.msra.mxu0 0.0
        %322 = vmatprep.subr.mxu0 0.0
        %323 = vmatpush2.xpose.msra.mxu0 0.0
        %324 = vmatprep.subr.mxu0 0.0
        %325 = vmatpush2.xpose.msra.mxu0 0.0
        %326 = vmatprep.subr.mxu0 0.0
        %327 = vmatpush2.xpose.msra.mxu0 0.0
        %328 = vmatprep.subr.mxu0 0.0
        %329 = vmatpush2.xpose.msra.mxu0 0.0
        %330 = vmatprep.subr.mxu0 0.0
        %331 = vmatpush2.xpose.msra.mxu0 0.0
        %332 = vmatprep.subr.mxu0 0.0
        %333 = vmatpush2.xpose.msra.mxu0 0.0
        %334 = vmatprep.subr.mxu0 0.0
        %335 = vmatpush2.xpose.msra.mxu0 0.0
        %336 = vmatprep.subr.mxu0 0.0
        %337 = vmatpush2.xpose.msra.mxu0 0.0
        %338 = vmatprep.subr.mxu0 0.0
        %339 = vmatpush2.xpose.msra.mxu0 0.0
        %340 = vmatprep.subr.mxu0 0.0
        %341 = vmatpush2.xpose.msra.mxu0 0.0
        %342 = vmatprep.subr.mxu0 0.0
        %343 = vmatpush2.xpose.msra.mxu0 0.0
        %344 = vmatprep.subr.mxu0 0.0
        %345 = vmatpush2.xpose.msra.mxu0 0.0
        %346 = vmatprep.subr.mxu0 0.0
        %347 = vmatpush2.xpose.msra.mxu0 0.0
        %348 = vmatprep.subr.mxu0 0.0
        %349 = vmatpush2.xpose.msra.mxu0 0.0
        %350 = vmatprep.subr.mxu0 0.0
        %351 = vmatpush2.xpose.msra.mxu0 0.0
        %352 = vmatprep.mubr.f32.mxu0 %v248
        %353 = vmatmul.mubr.f32.gmra.mxu0 %v247
        %v354 = vpop.f32.mrf.mxu0
        %v355 = vadd.f32 %v286, %v354
        %v356 = vpop.f32.mrf.mxu0
        %357 = vdwg.mxu0
        %358 = vst [vmem:[%s246] sm:$0xff] %v355
        %p359 = scmp.lt.s32.totalorder %s21, 0
        %s360 = scalar_select %p359, %s21, 0
        %p361 = scmp.lt.s32.totalorder %s22, 1
        %s362 = scalar_select %p361, %s22, 1
        %s363 = smul.addr %s360, 2
        %s364 = sadd.s32 %s362, %s363
        %s365 = smul.addr %s364, 8
        %s366 = scalar_lea.vmem %s3, %s365
        // Predicated region
        $region37: #{linear_layer_forward.1} parent=31 // pred_check
          %p367 = pneg %p127
        $region38: #{linear_layer_forward.1} parent=31 // pred_check_branch
          %369 = sbr.rel (%p367) target = $region40
        $region39: #{linear_layer_forward.1} parent=31 // pred_region
          _
        $region40: #{linear_layer_forward.1} parent=31 // pred_fallthru
          _
      $region32: #{linear_layer_forward.1} parent=5 // pred_fallthru
        _
      %p370 = scmp.le.s32.totalorder 2, %s12
      // Predicated region
      $region41: #{linear_layer_forward.1} parent=5 // pred_check
        %p371 = pneg %p370
      $region42: #{linear_layer_forward.1} parent=5 // pred_check_branch
        %373 = sbr.rel (%p371) target = $region44
      $region43: #{linear_layer_forward.1} parent=5 // pred_region
        %s374 = ssub.s32 %s12, 2
        // Predicated region
        $region45: #{linear_layer_forward.1} parent=43 // pred_check
          %p375 = pneg %p133
        $region46: #{linear_layer_forward.1} parent=43 // pred_check_branch
          %377 = sbr.rel (%p375) target = $region48
        $region47: #{linear_layer_forward.1} parent=43 // pred_region
          %p378 = scmp.lt.s32.totalorder %s23, 0
          %s379 = scalar_select %p378, %s23, 0
          %p380 = scmp.lt.s32.totalorder %s24, 1
          %s381 = scalar_select %p380, %s24, 1
          %s382 = smul.addr %s379, 2
          %s383 = sadd.s32 %s381, %s382
          %s384 = smul.addr %s383, 8
          %s385 = scalar_lea.vmem %s3, %s384
        $region48: #{linear_layer_forward.1} parent=43 // pred_fallthru
          _
      $region44: #{linear_layer_forward.1} parent=5 // pred_fallthru
        _
    $region6: #{linear_layer_forward.1} parent=1 // loop_footer
      %s16 = sadd.s32 1, %s12
    $region7: #{linear_layer_forward.1} parent=1 // loop_footer_branch
      %11 = sbr.rel target = $region3
    $region8: #{linear_layer_forward.1} parent=1 // loop_exit
      _
    %386 = vsyncpa [#allocation3], 1
    %s387 = scalar_lea.sflag [#allocation3], 1
    %388 = vsyncpa %s387, 1

</llo_original>
